<compile_context>
chip_gen: v7x
topology: tpu7x:2x2x1
jax: 0.10.0
libtpu: 0.0.40
codegen_flags: <defaults>
</compile_context>

<pallas_src>
import math
import functools

import jax
import jax.numpy as jnp
from jax.experimental import pallas as pl
from jax.experimental.pallas import tpu as pltpu


# --------------------------------------------------------------------------
# Parameter setup (mirrors PyTorch __init__) — plain JAX glue.
# --------------------------------------------------------------------------
def build_pe_table(d_model: int, max_len: int = 5000) -> jnp.ndarray:
    """Sinusoidal positional-encoding table of shape (max_len, d_model)."""
    position = jnp.arange(0.0, max_len, dtype=jnp.float32)[:, None]          # (L, 1)
    div_term = jnp.exp(
        jnp.arange(0.0, d_model, 2, dtype=jnp.float32)
        * -(math.log(10000.0) / d_model)
    )                                                                         # (D/2,)
    angles = position * div_term                                              # (L, D/2)
    pe = jnp.zeros((max_len, d_model), dtype=jnp.float32)
    pe = pe.at[:, 0::2].set(jnp.sin(angles))
    pe = pe.at[:, 1::2].set(jnp.cos(angles))
    return pe


# --------------------------------------------------------------------------
# Pallas kernels
# --------------------------------------------------------------------------
def _pe_add_kernel(x_ref, pe_ref, o_ref):
    # eval-mode dropout == identity: out = x + pe (pe broadcasts over batch).
    o_ref[...] = (x_ref[...] + pe_ref[...]).astype(o_ref.dtype)


def _pe_add_dropout_kernel(x_ref, pe_ref, r_ref, o_ref, *, threshold: int,
                           inv_keep: float):
    # training-mode dropout: keep where r < threshold (r uniform in [0, 2^31)),
    # scale kept values by 1/keep_prob.  Integer compare only — no float
    # uniform construction on the per-element path.
    y = x_ref[...] + pe_ref[...]
    keep = r_ref[...] < threshold
    o_ref[...] = jnp.where(keep, y * inv_keep, jnp.zeros_like(y)).astype(o_ref.dtype)


# --------------------------------------------------------------------------
# Wrapper
# --------------------------------------------------------------------------
class PositionalEncoding:
    def __init__(self, d_model: int, dropout: float, max_len: int = 5000):
        self.d_model = d_model
        self.p = float(dropout)
        self.pe = build_pe_table(d_model, max_len)       # (max_len, d_model) f32
        # tunables (per-generation tile sizing)
        self.small_bytes_threshold = 2 * 1024 * 1024     # <=2 MiB => single call
        self.target_block_bytes = 1 * 1024 * 1024        # ~1 MiB per block
        self.vmem_limit_bytes = 32 * 1024 * 1024         # safe on v5e/v6e/v7x

    # ---------------------- small-problem path ----------------------------
    def _call_small(self, x, pe_slice, r, threshold, inv_keep):
        B, S, D = x.shape
        L = S * D
        x2 = x.reshape(B, L)                   # lane-dense view for the store
        pe2 = pe_slice.reshape(1, L)
        out_shape = jax.ShapeDtypeStruct((B, L), x.dtype)
        if r is None:
            out = pl.pallas_call(_pe_add_kernel, out_shape=out_shape)(x2, pe2)
        else:
            kernel = functools.partial(
                _pe_add_dropout_kernel, threshold=threshold, inv_keep=inv_keep
            )
            out = pl.pallas_call(kernel, out_shape=out_shape)(
                x2, pe2, r.reshape(B, L)
            )
        return out.reshape(B, S, D)

    # ---------------------- tiled path -------------------------------------
    def _call_tiled(self, x, pe_slice, r, threshold, inv_keep):
        B, S, D = x.shape
        itemsize = jnp.dtype(x.dtype).itemsize
        ts = self.target_block_bytes // max(1, D * itemsize)
        ts = max(8, (ts // 8) * 8)             # sublane-aligned
        ts = min(ts, S)                        # TS == S => full-extent block
        grid = (pl.cdiv(S, ts), B)             # batch innermost => PE resident

        x_spec = pl.BlockSpec((1, ts, D), lambda s, b: (b, s, 0))
        pe_spec = pl.BlockSpec((ts, D), lambda s, b: (s, 0))   # invariant in b
        out_spec = pl.BlockSpec((1, ts, D), lambda s, b: (b, s, 0))
        cparams = pltpu.CompilerParams(
            dimension_semantics=("parallel", "parallel"),
            vmem_limit_bytes=self.vmem_limit_bytes,
        )
        out_shape = jax.ShapeDtypeStruct((B, S, D), x.dtype)

        if r is None:
            return pl.pallas_call(
                _pe_add_kernel,
                out_shape=out_shape,
                grid=grid,
                in_specs=[x_spec, pe_spec],
                out_specs=out_spec,
                compiler_params=cparams,
            )(x, pe_slice)

        kernel = functools.partial(
            _pe_add_dropout_kernel, threshold=threshold, inv_keep=inv_keep
        )
        r_spec = pl.BlockSpec((1, ts, D), lambda s, b: (b, s, 0))
        return pl.pallas_call(
            kernel,
            out_shape=out_shape,
            grid=grid,
            in_specs=[x_spec, pe_spec, r_spec],
            out_specs=out_spec,
            compiler_params=cparams,
        )(x, pe_slice, r)

    # ---------------------- public forward ---------------------------------
    def __call__(self, x: jnp.ndarray, *, training: bool = False, seed: int = 0):
        """x: (batch, seq_len, d_model)."""
        B, S, D = x.shape
        assert D == self.d_model
        pe_slice = self.pe[:S, :].astype(x.dtype)      # cast once in the wrapper

        use_dropout = training and self.p > 0.0
        r = None
        threshold = 0
        inv_keep = 1.0
        if use_dropout:
            keep_prob = 1.0 - self.p
            inv_keep = 1.0 / keep_prob
            threshold = min(int(round(keep_prob * float(2 ** 31))), 2 ** 31 - 1)
            key = jax.random.PRNGKey(seed)
            bits = jax.random.bits(key, (B, S, D), dtype=jnp.uint32)
            # uniform int in [0, 2^31) — signed-int compare inside the kernel
            r = (bits >> 1).astype(jnp.int32)

        total_bytes = x.size * jnp.dtype(x.dtype).itemsize
        if total_bytes <= self.small_bytes_threshold:
            return self._call_small(x, pe_slice, r, threshold, inv_keep)
        return self._call_tiled(x, pe_slice, r, threshold, inv_keep)


# --------------------------------------------------------------------------
# Main
# --------------------------------------------------------------------------
if __name__ == "__main__":
    key = jax.random.PRNGKey(0)
    batch, seq, d_model = 2, 8, 32
    x = jax.random.normal(key, (batch, seq, d_model), dtype=jnp.float32)

    pe_mod = PositionalEncoding(d_model=d_model, dropout=0.1, max_len=5000)

    # ---- eval-mode forward (dropout == identity): x + pe[:, :seq] ----------
    out = jax.block_until_ready(pe_mod(x, training=False))
    ref = x + pe_mod.pe[None, :seq, :]
    assert out.shape == (batch, seq, d_model)
    assert jnp.allclose(out, ref, atol=1e-6), "eval-mode mismatch vs reference"

    # ---- training-mode forward (dropout kernel) -----------------------------
    out_train = jax.block_until_ready(pe_mod(x, training=True, seed=42))
    assert out_train.shape == (batch, seq, d_model)
    keep_prob = 1.0 - 0.1
    scaled = ref / keep_prob
    ok = (out_train == 0) | (jnp.abs(out_train - scaled) < 1e-4)
    assert bool(jnp.all(ok)), "dropout-mode values are not {0, (x+pe)/keep_prob}"

    # ---- exercise the tiled (multi-block) path on a lane-dense shape --------
    key2 = jax.random.PRNGKey(1)
    d2, s2, b2 = 128, 64, 2
    pe_tiled = PositionalEncoding(d_model=d2, dropout=0.5, max_len=5000)
    pe_tiled.small_bytes_threshold = 0                 # force the tiled path
    pe_tiled.target_block_bytes = 8 * d2 * 4           # TS = 8 -> 8 seq tiles
    x2 = jax.random.normal(key2, (b2, s2, d2), dtype=jnp.float32)
    out2 = jax.block_until_ready(pe_tiled(x2, training=False))
    ref2 = x2 + pe_tiled.pe[None, :s2, :]
    assert jnp.allclose(out2, ref2, atol=1e-6), "tiled-path mismatch vs reference"
    out2_tr = jax.block_until_ready(pe_tiled(x2, training=True, seed=7))
    ok2 = (out2_tr == 0) | (jnp.abs(out2_tr - ref2 / 0.5) < 1e-4)
    assert bool(jnp.all(ok2)), "tiled dropout-mode values mismatch"

    print("KERNEL_OK")
</pallas_src>

<mosaic_0001>
module attributes {stable_mosaic.version = 11 : i64} {
  func.func @_pe_add_kernel(%arg0: memref<2x256xf32, #tpu.memory_space<vmem>>, %arg1: memref<1x256xf32, #tpu.memory_space<vmem>>, %arg2: memref<2x256xf32, #tpu.memory_space<vmem>>) attributes {dimension_semantics = [], scalar_prefetch = 0 : i64, scratch_operands = 0 : i64, tpu.core_type = #tpu.core_type<tc>} {
    %c0 = arith.constant 0 : index
    %c0_0 = arith.constant 0 : index
    %0 = vector.load %arg0[%c0, %c0_0] : memref<2x256xf32, #tpu.memory_space<vmem>>, vector<2x256xf32>
    %c0_1 = arith.constant 0 : index
    %c0_2 = arith.constant 0 : index
    %1 = vector.load %arg1[%c0_1, %c0_2] : memref<1x256xf32, #tpu.memory_space<vmem>>, vector<1x256xf32>
    %2 = vector.broadcast %1 : vector<1x256xf32> to vector<2x256xf32>
    %3 = arith.addf %0, %2 : vector<2x256xf32>
    %c0_3 = arith.constant 0 : index
    %c0_4 = arith.constant 0 : index
    %4 = vector.load %arg2[%c0_3, %c0_4] : memref<2x256xf32, #tpu.memory_space<vmem>>, vector<2x256xf32>
    tpu.vector_store %arg2[%c0_3, %c0_4], %3 {strides = array<i32>} : memref<2x256xf32, #tpu.memory_space<vmem>>, vector<2x256xf32>,
    return
  }
}

</mosaic_0001>

<llo_original>
// kernel: tpu_custom_call.1
$region0: #{tpu_custom_call.1}
  #allocation0 [shape = 'u32[]', space=smem, size = 0x4, offset = 0x4, fixed_abs, tag = 'smem constant byte address 0x4 - core index']
  #allocation1 [shape = 'u32[144,128]{1,0:T(1,128)}', space=vmem, size = 0x12000, scoped, tag = 'internal scratch']
  %s0 = inlined_call_operand.hbm [shape: f32[2,256], index: 0, kind: input, shape index: {}]
  %s1 = inlined_call_operand.vmem [shape: f32[1,256], index: 1, kind: input, shape index: {}]
  %s2 = inlined_call_operand.hbm [shape: f32[2,256], index: 2, kind: output, shape index: {}]
  %s3 = sld [smem:[#allocation0]]
  $region22: #{tpu_custom_call.1} parent=0
    _
  %s5 = ssub.s32 1, %s3
  %s6 = scalar_select 0, %s5, %s3
  $region1: #{tpu_custom_call.1} parent=0
    #allocation2 [shape = 'u8[2048]{0}', space=vmem, size = 0x800, scoped, tag = 'input window, operand 0, single buffered']
    #allocation3 [shape = 's32[1]{0}', space=sflag, size = 0x4, scoped, tag = 'scoped memory for tpu_custom_call.1']
    #allocation4 [shape = 's32[1]{0}', space=sflag, size = 0x4, scoped, tag = 'scoped memory for tpu_custom_call.1']
    #allocation5 [shape = 'u8[2048]{0}', space=vmem, size = 0x800, scoped, tag = 'output window, operand 0, single buffered']
    %7 = vsyncpa [#allocation3], 0
    %8 = vsyncpa [#allocation4], 0
    // Predicated region
    $region2: #{tpu_custom_call.1} parent=1 // pred_check
      _
    $region3: #{tpu_custom_call.1} parent=1 // pred_check_branch
      %10 = sbr.rel (0) target = $region5
    $region4: #{tpu_custom_call.1} parent=1 // pred_region
      %s12 = ssub.s32 64, 64
      %13 = vsyncadd [#allocation3], %s12
      %s15 = sshll.u32 [#allocation2], 4
      %s16 = int_to_ptr.vmem [resolvable:$true] %s15
      %18 = dma.hbm_to_vmem [thread:$0]  %s0, 64, %s16, [#allocation3]
    $region5: #{tpu_custom_call.1} parent=1 // pred_fallthru
      _
    // Predicated region
    $region6: #{tpu_custom_call.1} parent=1 // pred_check
      _
    $region7: #{tpu_custom_call.1} parent=1 // pred_check_branch
      %20 = sbr.rel (0) target = $region9
    $region8: #{tpu_custom_call.1} parent=1 // pred_region
      _
    $region9: #{tpu_custom_call.1} parent=1 // pred_fallthru
      _
    // Predicated region
    $region10: #{tpu_custom_call.1} parent=1 // pred_check
      _
    $region11: #{tpu_custom_call.1} parent=1 // pred_check_branch
      %22 = sbr.rel (0) target = $region13
    $region12: #{tpu_custom_call.1} parent=1 // pred_region
      %23 = dma.done [#allocation3], 64
    $region13: #{tpu_custom_call.1} parent=1 // pred_fallthru
      _
    %v24 = vld [vmem:[#allocation2] sm:$0xf]
    %v25 = vld [vmem:[%s1] sm:$0x3]
    %v27 = vlaneseq
    %v28 = vshrl.u32 %v27, 7
    %v29 = vsub.s32 0, %v28
    %v30 = vrot.slane %v25, %v29
    %v31 = vlaneseq
    %v32 = vshrl.u32 %v31, 7
    %v33 = vsub.s32 1, %v32
    %v34 = vrot.slane %v25, %v33
    %v35 = vcombine.low %v30, %v34
    %v37 = vunpack.c.l.s4 1983009808
    %v38 = vunpack.c.0.s8 %v37
    %v39 = vlaneseq
    %v40 = vshrl.u32 %v39, 7
    %v41 = vsub.s32 %v38, %v40
    %v42 = vrot.slane %v35, %v41
    %v44 = vadd.f32 %v24, %v42
    %45 = vst [vmem:[#allocation5] sm:$0xf] %v44
    // Predicated region
    $region14: #{tpu_custom_call.1} parent=1 // pred_check
      _
    $region15: #{tpu_custom_call.1} parent=1 // pred_check_branch
      %47 = sbr.rel (0) target = $region17
    $region16: #{tpu_custom_call.1} parent=1 // pred_region
      %s49 = ssub.s32 64, 64
      %50 = vsyncadd [#allocation4], %s49
      %s52 = sshll.u32 [#allocation5], 4
      %s53 = int_to_ptr.vmem [resolvable:$true] %s52
      %55 = dma.vmem_to_hbm [thread:$0]  %s53, 64, %s2, [#allocation4]
    $region17: #{tpu_custom_call.1} parent=1 // pred_fallthru
      _
    // Predicated region
    $region18: #{tpu_custom_call.1} parent=1 // pred_check
      _
    $region19: #{tpu_custom_call.1} parent=1 // pred_check_branch
      %57 = sbr.rel (0) target = $region21
    $region20: #{tpu_custom_call.1} parent=1 // pred_region
      %58 = dma.done [#allocation4], 64
    $region21: #{tpu_custom_call.1} parent=1 // pred_fallthru
      _
    %59 = vsyncpa [#allocation3], 1
    %60 = vsyncpa [#allocation4], 1

</llo_original>
